<compile_context>
chip_gen: v6e
topology: v6e:2x2x1
jax: 0.10.0
libtpu: 0.0.40
codegen_flags: <defaults>
</compile_context>

<pallas_src>
import functools

import jax
import jax.numpy as jnp
from jax.experimental import pallas as pl
from jax.experimental.pallas import tpu as pltpu

IN_NC = 3
OUT_NC = 3
NF = 32          # num_filters
GC = 32          # growth channels (hard-coded to 32 in SPSRNet's RRDB calls)
NUM_BLOCKS = 20  # forward requires >= 20 trunk RRDBs
UPSCALE = 4      # -> 2 nearest-upconv stages

_NEG = 0.2       # LeakyReLU negative slope

# Generation-aware VMEM budgeting (v7x: 64 MiB physical; v5e/v6e: 128 MiB).
try:
    _VMEM_CAP = int(pltpu.get_tpu_info().vmem_capacity_bytes)
except Exception:
    _VMEM_CAP = 64 * 1024 * 1024
_VMEM_LIMIT = min((_VMEM_CAP * 3) // 4, 100 * 1024 * 1024)
# Per-chunk im2col slab budget (bf16 elements).
_SLAB_ELEMS = (2 << 20) if _VMEM_CAP > (80 << 20) else (1 << 20)


def _rows_per_chunk(H, W, cin):
    """Rows per in-kernel chunk so the (rows*W, 9*cin) slab stays small."""
    per_row = W * 9 * cin
    rows = max(1, _SLAB_ELEMS // per_row)
    if rows >= H:
        return H
    if rows >= 8:
        rows = (rows // 8) * 8
    return rows


# ----------------------------------------------------------------------------
# In-kernel conv helper: 3x3 conv from a zero-padded VMEM scratch.
# ----------------------------------------------------------------------------
def _conv_from_pad(pad_ref, cin, w, b, *, H, W, rows, act, store):
    """3x3 conv over channels [0:cin) of the padded scratch `pad_ref`.

    The 9 taps are folded into the contraction: for each row chunk we build a
    (rows*W, 9*cin) bf16 im2col slab from static slices of the padded scratch
    and run one MXU matmul against the (9*cin, cout) weight with f32
    accumulation.  `store(r0, rh, acc_f32)` consumes each chunk.
    """
    r0 = 0
    while r0 < H:
        rh = min(rows, H - r0)
        taps = [
            pad_ref[r0 + dy:r0 + dy + rh, dx:dx + W, :cin].reshape(rh * W, cin)
            for dy in range(3)
            for dx in range(3)
        ]
        slab = jnp.concatenate(taps, axis=-1)                  # (rh*W, 9*cin)
        acc = jnp.dot(slab, w, preferred_element_type=jnp.float32) + b
        if act:  # LeakyReLU(0.2)
            acc = jnp.where(acc >= 0, acc, _NEG * acc)
        store(r0, rh, acc)
        r0 += rh


# ----------------------------------------------------------------------------
# Generic fused 3x3 conv kernel (optional LeakyReLU, optional residual add).
# ----------------------------------------------------------------------------
def _conv3x3_kernel(x_ref, w_ref, b_ref, *rest, H, W, cin, cout, act,
                    has_res, rows):
    if has_res:
        res_ref, o_ref, pad_ref = rest
    else:
        res_ref = None
        o_ref, pad_ref = rest

    pad_ref[...] = jnp.zeros_like(pad_ref)
    pad_ref[1:H + 1, 1:W + 1, :] = x_ref[...].astype(pad_ref.dtype)
    w = w_ref[...]
    b = b_ref[...]

    def store(r0, rh, acc):
        out = acc.reshape(rh, W, cout)
        if has_res:
            out = out + res_ref[r0:r0 + rh, :, :]
        o_ref[r0:r0 + rh, :, :] = out.astype(o_ref.dtype)

    _conv_from_pad(pad_ref, cin, w, b, H=H, W=W, rows=rows, act=act,
                   store=store)


@functools.partial(jax.jit, static_argnames=("act",))
def conv3x3(x, w, b, res=None, *, act=False):
    """3x3 conv, stride 1, zero pad 1, optional LeakyReLU(0.2) / residual add.

    x: (N,H,W,Cin) f32; w: (9*Cin,Cout) bf16; b: (1,Cout) f32;
    res: (N,H,W,Cout) f32 or None (fused `conv(x) + res`).
    """
    N, H, W, cin = x.shape
    cout = w.shape[-1]
    has_res = res is not None
    rows = _rows_per_chunk(H, W, cin)

    in_specs = [
        pl.BlockSpec((None, H, W, cin), lambda n: (n, 0, 0, 0)),
        pl.BlockSpec(w.shape, lambda n: (0, 0)),     # weight resident in VMEM
        pl.BlockSpec(b.shape, lambda n: (0, 0)),
    ]
    inputs = [x, w, b]
    if has_res:
        in_specs.append(pl.BlockSpec((None, H, W, cout), lambda n: (n, 0, 0, 0)))
        inputs.append(res)

    return pl.pallas_call(
        functools.partial(_conv3x3_kernel, H=H, W=W, cin=cin, cout=cout,
                          act=act, has_res=has_res, rows=rows),
        out_shape=jax.ShapeDtypeStruct((N, H, W, cout), jnp.float32),
        grid_spec=pltpu.PrefetchScalarGridSpec(
            num_scalar_prefetch=0,
            grid=(N,),
            in_specs=in_specs,
            out_specs=pl.BlockSpec((None, H, W, cout), lambda n: (n, 0, 0, 0)),
            scratch_shapes=[pltpu.VMEM((H + 2, W + 2, cin), jnp.bfloat16)],
        ),
        compiler_params=pltpu.CompilerParams(
            dimension_semantics=("parallel",),
            vmem_limit_bytes=_VMEM_LIMIT,
        ),
    )(*inputs)


# ----------------------------------------------------------------------------
# Fused RRDB kernel: 3 dense blocks (15 convs), dense concats via channel
# offsets into one VMEM scratch, all residuals fused.  One launch per RRDB.
# ----------------------------------------------------------------------------
def _rrdb_kernel(x_ref, w1, b1, w2, b2, w3, b3, w4, b4, w5, b5, o_ref,
                 pad_ref, cur_ref, *, H, W, nc, gc, rows):
    ws = (w1, w2, w3, w4, w5)
    bs = (b1, b2, b3, b4, b5)

    pad_ref[...] = jnp.zeros_like(pad_ref)       # zero borders once
    cur_ref[...] = x_ref[...]                    # f32 running features

    for r in range(3):                           # 3 RDBs per RRDB
        # current features -> channels [0:nc) of the padded scratch
        pad_ref[1:H + 1, 1:W + 1, :nc] = cur_ref[...].astype(pad_ref.dtype)

        for i in range(4):                       # conv1..conv4 (+ LeakyReLU)
            cin = nc + i * gc
            off = nc + i * gc

            def store(r0, rh, acc, off=off):
                pad_ref[1 + r0:1 + r0 + rh, 1:W + 1, off:off + gc] = (
                    acc.reshape(rh, W, gc).astype(pad_ref.dtype))

            _conv_from_pad(pad_ref, cin, ws[i][r], bs[i][r],
                           H=H, W=W, rows=rows, act=True, store=store)

        # conv5 (no act) with fused 0.2-scaled dense-block residual
        def store5(r0, rh, acc):
            cur_ref[r0:r0 + rh, :, :] = (
                acc.reshape(rh, W, nc) * 0.2 + cur_ref[r0:r0 + rh, :, :])

        _conv_from_pad(pad_ref, nc + 4 * gc, ws[4][r], bs[4][r],
                       H=H, W=W, rows=rows, act=False, store=store5)

    # RRDB residual (f32)
    o_ref[...] = cur_ref[...] * 0.2 + x_ref[...]


@jax.jit
def rrdb(x, ws, bs):
    """Fused RRDB.  x: (N,H,W,nc) f32.
    ws[i]: (3, 9*(nc+i*gc), cout_i) bf16, bs[i]: (3, 1, cout_i) f32."""
    N, H, W, nc = x.shape
    gc = ws[0].shape[-1]
    rows = _rows_per_chunk(H, W, nc + 4 * gc)

    in_specs = [pl.BlockSpec((None, H, W, nc), lambda n: (n, 0, 0, 0))]
    inputs = [x]
    for i in range(5):
        in_specs.append(pl.BlockSpec(ws[i].shape, lambda n: (0, 0, 0)))
        in_specs.append(pl.BlockSpec(bs[i].shape, lambda n: (0, 0, 0)))
        inputs += [ws[i], bs[i]]

    return pl.pallas_call(
        functools.partial(_rrdb_kernel, H=H, W=W, nc=nc, gc=gc, rows=rows),
        out_shape=jax.ShapeDtypeStruct((N, H, W, nc), jnp.float32),
        grid_spec=pltpu.PrefetchScalarGridSpec(
            num_scalar_prefetch=0,
            grid=(N,),
            in_specs=in_specs,
            out_specs=pl.BlockSpec((None, H, W, nc), lambda n: (n, 0, 0, 0)),
            scratch_shapes=[
                pltpu.VMEM((H + 2, W + 2, nc + 4 * gc), jnp.bfloat16),
                pltpu.VMEM((H, W, nc), jnp.float32),
            ],
        ),
        compiler_params=pltpu.CompilerParams(
            dimension_semantics=("parallel",),
            vmem_limit_bytes=_VMEM_LIMIT,
        ),
    )(*inputs)
    # TODO(synk): add halo-based spatial tiling + an M-parallel grid axis so a
    # batch-1 run still uses both v7x TensorCores and huge images stay in VMEM.


# ----------------------------------------------------------------------------
# Get_gradient_nopadding kernel (runs once; zero-padded central differences).
# ----------------------------------------------------------------------------
def _grad_kernel(x_ref, o_ref, *, H, W):
    v = x_ref[2:H + 2, 1:W + 1, :] - x_ref[0:H, 1:W + 1, :]
    h = x_ref[1:H + 1, 2:W + 2, :] - x_ref[1:H + 1, 0:W, :]
    o_ref[...] = jnp.sqrt(v * v + h * h + 1e-6)


@jax.jit
def get_gradient(x):
    """Per-channel sqrt(gx^2 + gy^2 + 1e-6).  x: (N,H,W,C) f32."""
    N, H, W, C = x.shape
    xp = jnp.pad(x, ((0, 0), (1, 1), (1, 1), (0, 0)))
    return pl.pallas_call(
        functools.partial(_grad_kernel, H=H, W=W),
        out_shape=jax.ShapeDtypeStruct((N, H, W, C), jnp.float32),
        grid_spec=pltpu.PrefetchScalarGridSpec(
            num_scalar_prefetch=0,
            grid=(N,),
            in_specs=[pl.BlockSpec((None, H + 2, W + 2, C), lambda n: (n, 0, 0, 0))],
            out_specs=pl.BlockSpec((None, H, W, C), lambda n: (n, 0, 0, 0)),
        ),
        compiler_params=pltpu.CompilerParams(
            dimension_semantics=("parallel",),
            vmem_limit_bytes=_VMEM_LIMIT,
        ),
    )(xp)


# ----------------------------------------------------------------------------
# Parameters (deterministic synthetic init, kernel-friendly layout)
# ----------------------------------------------------------------------------
class _ParamGen:
    def __init__(self, key):
        self.key = key
        self.i = 0

    def conv(self, cin, cout):
        self.i += 1
        k = jax.random.fold_in(self.key, self.i)
        w = jax.random.normal(k, (3, 3, cin, cout), jnp.float32) * 0.02
        w = w.reshape(9 * cin, cout).astype(jnp.bfloat16)   # (ky,kx,cin)-major
        b = jnp.zeros((1, cout), jnp.float32)
        return (w, b)

    def rrdb(self, nc, gc):
        # For each of the 5 dense-block conv positions, stack the 3 RDBs.
        ws, bs = [], []
        for i in range(5):
            cin = nc + i * gc
            cout = gc if i < 4 else nc
            w3, b3 = [], []
            for _ in range(3):
                w, b = self.conv(cin, cout)
                w3.append(w)
                b3.append(b)
            ws.append(jnp.stack(w3, 0))       # (3, 9*cin, cout) bf16
            bs.append(jnp.stack(b3, 0))       # (3, 1, cout)    f32
        return (tuple(ws), tuple(bs))


def make_params(key):
    g = _ParamGen(key)
    P = {}
    P["fea"] = g.conv(IN_NC, NF)
    P["rrdb"] = [g.rrdb(NF, GC) for _ in range(NUM_BLOCKS)]
    P["lr_conv"] = g.conv(NF, NF)
    P["up1"] = g.conv(NF, NF)
    P["up2"] = g.conv(NF, NF)
    P["hr0"] = g.conv(NF, NF)          # HR_conv0_new (conv + lrelu)
    P["hr1"] = g.conv(NF, NF)          # HR_conv1_new (conv)
    P["b_fea"] = g.conv(IN_NC, NF)
    P["b_block"] = [g.rrdb(2 * NF, GC) for _ in range(4)]
    P["b_concat"] = [g.conv(2 * NF, NF) for _ in range(4)]
    P["b_lr"] = g.conv(NF, NF)
    P["b_up1"] = g.conv(NF, NF)
    P["b_up2"] = g.conv(NF, NF)
    P["b_hr0"] = g.conv(NF, NF)
    P["b_hr1"] = g.conv(NF, NF)
    P["f_block"] = g.rrdb(2 * NF, GC)
    P["f_concat"] = g.conv(2 * NF, NF)
    P["f_hr0"] = g.conv(NF, NF)
    P["f_hr1"] = g.conv(NF, OUT_NC)
    # TODO(synk): conv_w (1x1) exists in the PyTorch module but is unused by
    # forward -> omitted.
    return P


# ----------------------------------------------------------------------------
# Model forward (mirrors SPSRNet.forward)
# ----------------------------------------------------------------------------
def rrdb_forward(x, p):
    ws, bs = p
    return rrdb(x, ws, bs)


def upconv_forward(x, p):
    # nn.Upsample(scale_factor=2, mode='nearest') then conv + LeakyReLU.
    # TODO(synk): the nearest-x2 replication is JAX glue; folding it into the
    # conv kernel's padded-scratch fill would avoid one HBM round trip.
    x = jnp.repeat(jnp.repeat(x, 2, axis=1), 2, axis=2)
    return conv3x3(x, *p, act=True)


def spsr_forward(x_nchw, P):
    x = jnp.transpose(x_nchw, (0, 2, 3, 1))        # -> NHWC

    x_grad = get_gradient(x)

    # trunk
    x = conv3x3(x, *P["fea"], act=False)           # model[0] (fea_conv)
    x_ori = x
    feats = []
    for i in range(NUM_BLOCKS):
        x = rrdb_forward(x, P["rrdb"][i])
        if (i + 1) % 5 == 0:
            feats.append(x)
    x_fea1, x_fea2, x_fea3, x_fea4 = feats[:4]
    x = conv3x3(x, *P["lr_conv"], res=x_ori, act=False)   # LR_conv + x_ori fused
    x = upconv_forward(x, P["up1"])                # model[2:]
    x = upconv_forward(x, P["up2"])
    x = conv3x3(x, *P["hr0"], act=True)            # HR_conv0_new
    x = conv3x3(x, *P["hr1"], act=False)           # HR_conv1_new

    # gradient branch
    x_b_fea = conv3x3(x_grad, *P["b_fea"], act=False)
    x_cat = x_b_fea
    for j, feat in enumerate([x_fea1, x_fea2, x_fea3, x_fea4]):
        x_cat = jnp.concatenate([x_cat, feat], axis=-1)
        x_cat = rrdb_forward(x_cat, P["b_block"][j])
        x_cat = conv3x3(x_cat, *P["b_concat"][j], act=False)
    x_cat = conv3x3(x_cat, *P["b_lr"], res=x_b_fea, act=False)  # b_LR + residual
    xb = upconv_forward(x_cat, P["b_up1"])
    xb = upconv_forward(xb, P["b_up2"])
    xb = conv3x3(xb, *P["b_hr0"], act=True)
    xb = conv3x3(xb, *P["b_hr1"], act=False)       # x_branch

    # fusion
    x_f_cat = jnp.concatenate([xb, x], axis=-1)
    x_f_cat = rrdb_forward(x_f_cat, P["f_block"])
    x_out = conv3x3(x_f_cat, *P["f_concat"], act=False)
    x_out = conv3x3(x_out, *P["f_hr0"], act=True)
    x_out = conv3x3(x_out, *P["f_hr1"], act=False)

    return jnp.transpose(x_out, (0, 3, 1, 2))      # -> NCHW


# ----------------------------------------------------------------------------
if __name__ == "__main__":
    key = jax.random.PRNGKey(0)
    x = jax.random.normal(key, (2, IN_NC, 16, 16), jnp.float32)  # NCHW input
    params = make_params(jax.random.fold_in(key, 1))

    out = spsr_forward(x, params)
    out = jax.block_until_ready(out)

    expected = (2, OUT_NC, 16 * UPSCALE, 16 * UPSCALE)
    assert out.shape == expected, (out.shape, expected)
    assert out.dtype == jnp.float32
    assert bool(jnp.all(jnp.isfinite(out)))
    print("KERNEL_OK")
</pallas_src>

<mosaic_0001>
module attributes {stable_mosaic.version = 11 : i64} {
  func.func @_grad_kernel(%arg0: i32, %arg1: memref<1x18x18x3xf32, #tpu.memory_space<vmem>>, %arg2: memref<1x16x16x3xf32, #tpu.memory_space<vmem>>) attributes {dimension_semantics = [#tpu.dimension_semantics<parallel>], iteration_bounds = array<i64: 2>, scalar_prefetch = 0 : i64, scratch_operands = 0 : i64, tpu.core_type = #tpu.core_type<tc>, window_params = [{transform_indices = @transform_0, window_bounds = array<i64: 1, 18, 18, 3>}, {transform_indices = @transform_1, window_bounds = array<i64: 1, 16, 16, 3>}]} {
    %c0 = arith.constant 0 : index
    %c2 = arith.constant 2 : index
    %c1 = arith.constant 1 : index
    %c0_0 = arith.constant 0 : index
    %0 = vector.load %arg1[%c0, %c2, %c1, %c0_0] : memref<1x18x18x3xf32, #tpu.memory_space<vmem>>, vector<1x16x16x3xf32>
    %1 = vector.shape_cast %0 : vector<1x16x16x3xf32> to vector<16x16x3xf32>
    %c0_1 = arith.constant 0 : index
    %c0_2 = arith.constant 0 : index
    %c1_3 = arith.constant 1 : index
    %c0_4 = arith.constant 0 : index
    %2 = vector.load %arg1[%c0_1, %c0_2, %c1_3, %c0_4] : memref<1x18x18x3xf32, #tpu.memory_space<vmem>>, vector<1x16x16x3xf32>
    %3 = vector.shape_cast %2 : vector<1x16x16x3xf32> to vector<16x16x3xf32>
    %4 = arith.subf %1, %3 : vector<16x16x3xf32>
    %c0_5 = arith.constant 0 : index
    %c1_6 = arith.constant 1 : index
    %c2_7 = arith.constant 2 : index
    %c0_8 = arith.constant 0 : index
    %5 = vector.load %arg1[%c0_5, %c1_6, %c2_7, %c0_8] : memref<1x18x18x3xf32, #tpu.memory_space<vmem>>, vector<1x16x16x3xf32>
    %6 = vector.shape_cast %5 : vector<1x16x16x3xf32> to vector<16x16x3xf32>
    %c0_9 = arith.constant 0 : index
    %c1_10 = arith.constant 1 : index
    %c0_11 = arith.constant 0 : index
    %c0_12 = arith.constant 0 : index
    %7 = vector.load %arg1[%c0_9, %c1_10, %c0_11, %c0_12] : memref<1x18x18x3xf32, #tpu.memory_space<vmem>>, vector<1x16x16x3xf32>
    %8 = vector.shape_cast %7 : vector<1x16x16x3xf32> to vector<16x16x3xf32>
    %9 = arith.subf %6, %8 : vector<16x16x3xf32>
    %10 = arith.mulf %4, %4 : vector<16x16x3xf32>
    %11 = arith.mulf %9, %9 : vector<16x16x3xf32>
    %12 = arith.addf %10, %11 : vector<16x16x3xf32>
    %cst = arith.constant 9.99999997E-7 : f32
    %13 = vector.broadcast %cst : f32 to vector<16x16x3xf32>
    %14 = arith.addf %12, %13 : vector<16x16x3xf32>
    %15 = math.sqrt %14 : vector<16x16x3xf32>
    %c0_13 = arith.constant 0 : index
    %c0_14 = arith.constant 0 : index
    %c0_15 = arith.constant 0 : index
    %c0_16 = arith.constant 0 : index
    %16 = vector.load %arg2[%c0_13, %c0_14, %c0_15, %c0_16] : memref<1x16x16x3xf32, #tpu.memory_space<vmem>>, vector<1x16x16x3xf32>
    %17 = vector.shape_cast %16 : vector<1x16x16x3xf32> to vector<16x16x3xf32>
    %18 = vector.shape_cast %15 : vector<16x16x3xf32> to vector<1x16x16x3xf32>
    tpu.vector_store %arg2[%c0_13, %c0_14, %c0_15, %c0_16], %18 {strides = array<i32>} : memref<1x16x16x3xf32, #tpu.memory_space<vmem>>, vector<1x16x16x3xf32>,
    return
  }
  func.func @transform_0(%arg0: i32) -> (i32, i32, i32, i32) {
    %c0_i32 = arith.constant 0 : i32
    %c0_i32_0 = arith.constant 0 : i32
    %c0_i32_1 = arith.constant 0 : i32
    %c0_i32_2 = arith.constant 0 : i32
    return %arg0, %c0_i32, %c0_i32_0, %c0_i32_1 : i32, i32, i32, i32
  }
  func.func @transform_1(%arg0: i32) -> (i32, i32, i32, i32) {
    %c0_i32 = arith.constant 0 : i32
    %c0_i32_0 = arith.constant 0 : i32
    %c0_i32_1 = arith.constant 0 : i32
    %c0_i32_2 = arith.constant 0 : i32
    return %arg0, %c0_i32, %c0_i32_0, %c0_i32_1 : i32, i32, i32, i32
  }
}

</mosaic_0001>

<llo_original>
// kernel: get_gradient.1
$region0: #{get_gradient.1}
  #allocation0 [shape = 'u32[]', space=smem, size = 0x4, offset = 0x4, fixed_abs, tag = 'smem constant byte address 0x4 - core index']
  #allocation1 [shape = 'u32[144,128]{1,0:T(1,128)}', space=vmem, size = 0x12000, scoped, tag = 'internal scratch']
  %s0 = inlined_call_operand.vmem [shape: f32[2,18,18,3], index: 0, kind: input, shape index: {}]
  %s1 = inlined_call_operand.vmem [shape: f32[2,16,16,3], index: 1, kind: output, shape index: {}]
  %s2 = sld [smem:[#allocation0]]
  $region37: #{get_gradient.1} parent=0
    _
  %s4 = ssub.s32 1, %s2
  %s5 = scalar_select 0, %s4, %s2
  loop: start=0, step=1, limit=4
  $region2: #{get_gradient.1} parent=0 // loop_pre_header
    _
  $region3: #{get_gradient.1} parent=0 // loop_header
    %s7 = sphi 0, %s11
    %p8 = scmp.ge.s32.totalorder %s7, 4
    %s17 = sphi 0, %s19
    %s20 = sphi 0, %s17
    %s21 = sphi 0, %s20
    %s37 = sphi 0, %s21
    %s43 = sphi 0, %s45
    %s46 = sphi 0, %s43
    %s47 = sphi 0, %s46
    %s63 = sphi 0, %s47
  $region4: #{get_gradient.1} parent=0 // loop_header_branch
    %10 = sbr.rel (%p8) target = $region8
  $region5: #{get_gradient.1} parent=0 // loop_body
    %s12 = ssub.s32 %s7, 1
    %s13 = ssub.s32 %s7, 2
    %s14 = sadd.s32 %s7, 1
    %s15 = ssub.s32 %s7, %s14
    %p16 = scmp.eq.s32.totalorder %s15, 0
    %s18 = sadd.s32 %s17, 1
    %s19 = scalar_select %p16, %s17, %s18
    %p22 = pneg %p16
    %p23 = scmp.eq.s32.totalorder %s7, 1
    %p24 = por %p22, %p23
    %p25 = scmp.ne.s32.totalorder %s17, %s20
    %p26 = scmp.eq.s32.totalorder %s7, 0
    %p27 = por %p25, %p26
    %p28 = scmp.ne.s32.totalorder %s17, %s20
    %p29 = scmp.eq.s32.totalorder %s12, 1
    %p30 = por %p28, %p29
    %p31 = scmp.ne.s32.totalorder %s20, %s21
    %p32 = scmp.eq.s32.totalorder %s12, 0
    %p33 = por %p31, %p32
    %p34 = scmp.ne.s32.totalorder %s20, %s21
    %p35 = scmp.eq.s32.totalorder %s13, 1
    %p36 = por %p34, %p35
    %p38 = scmp.ne.s32.totalorder %s21, %s37
    %p39 = scmp.eq.s32.totalorder %s13, 0
    %p40 = por %p38, %p39
    %s41 = ssub.s32 %s7, %s14
    %p42 = scmp.eq.s32.totalorder %s41, 0
    %s44 = sadd.s32 %s43, 1
    %s45 = scalar_select %p42, %s43, %s44
    %p48 = pneg %p42
    %p49 = scmp.eq.s32.totalorder %s7, 1
    %p50 = por %p48, %p49
    %p51 = scmp.ne.s32.totalorder %s43, %s46
    %p52 = scmp.eq.s32.totalorder %s7, 0
    %p53 = por %p51, %p52
    %p54 = scmp.ne.s32.totalorder %s43, %s46
    %p55 = scmp.eq.s32.totalorder %s12, 1
    %p56 = por %p54, %p55
    %p57 = scmp.ne.s32.totalorder %s46, %s47
    %p58 = scmp.eq.s32.totalorder %s12, 0
    %p59 = por %p57, %p58
    %p60 = scmp.ne.s32.totalorder %s46, %s47
    %p61 = scmp.eq.s32.totalorder %s13, 1
    %p62 = por %p60, %p61
    %p64 = scmp.ne.s32.totalorder %s47, %s63
    %p65 = scmp.eq.s32.totalorder %s13, 0
    %p66 = por %p64, %p65
    %p67 = scmp.le.s32.totalorder 1, %s7
    %p68 = scmp.lt.s32.totalorder %s7, 3
    %p69 = pnand %p67, %p68
    %p70 = pneg %p69
    // Predicated region
    $region9: #{get_gradient.1} parent=5 // pred_check
      _
    $region10: #{get_gradient.1} parent=5 // pred_check_branch
      %72 = sbr.rel (%p69) target = $region12
    $region11: #{get_gradient.1} parent=5 // pred_region
      %s73 = ssub.s32 %s7, 1
    $region12: #{get_gradient.1} parent=5 // pred_fallthru
      _
    %p74 = scmp.lt.s32.totalorder %s7, 2
    // Predicated region
    $region13: #{get_gradient.1} parent=5 // pred_check
      %p75 = pneg %p74
    $region14: #{get_gradient.1} parent=5 // pred_check_branch
      %77 = sbr.rel (%p75) target = $region16
    $region15: #{get_gradient.1} parent=5 // pred_region
      // Predicated region
      $region17: #{get_gradient.1} parent=15 // pred_check
        %p78 = pneg %p27
      $region18: #{get_gradient.1} parent=15 // pred_check_branch
        %80 = sbr.rel (%p78) target = $region20
      $region19: #{get_gradient.1} parent=15 // pred_region
        %p81 = scmp.lt.s32.totalorder %s7, 1
        %s82 = scalar_select %p81, %s7, 1
        %s83 = smul.addr %s82, 54
        %s84 = smul.addr %s83, 8
        %s85 = scalar_lea.vmem %s0, %s84
      $region20: #{get_gradient.1} parent=15 // pred_fallthru
        _
    $region16: #{get_gradient.1} parent=5 // pred_fallthru
      _
    %p86 = scmp.le.s32.totalorder 1, %s7
    %p87 = scmp.lt.s32.totalorder %s7, 3
    %p88 = pnand %p86, %p87
    %p89 = pneg %p88
    // Predicated region
    $region21: #{get_gradient.1} parent=5 // pred_check
      _
    $region22: #{get_gradient.1} parent=5 // pred_check_branch
      %91 = sbr.rel (%p88) target = $region24
    $region23: #{get_gradient.1} parent=5 // pred_region
      %s92 = ssub.s32 %s7, 1
      %p93 = scmp.lt.s32.totalorder %s12, 1
      %s94 = scalar_select %p93, %s12, 1
      %s95 = smul.addr %s94, 54
      %s96 = smul.addr %s95, 8
      %s97 = scalar_lea.vmem %s0, %s96
      %p98 = pneg %p33
      %p99 = pneg %p30
      %p100 = pneg %p59
      %p101 = pneg %p56
      %p102 = scmp.lt.s32.totalorder %s12, 1
      %s103 = scalar_select %p102, %s12, 1
      %s104 = smul.addr %s103, 32
      %s105 = smul.addr %s104, 8
      %s106 = scalar_lea.vmem %s1, %s105
      %p107 = scmp.lt.s32.totalorder %s12, 1
      %s108 = scalar_select %p107, %s12, 1
      %s109 = smul.addr %s108, 54
      %s110 = smul.addr %s109, 8
      %s111 = scalar_lea.vmem %s0, %s110
      %p112 = scmp.lt.s32.totalorder %s12, 1
      %s113 = scalar_select %p112, %s12, 1
      %s114 = smul.addr %s113, 32
      %s115 = smul.addr %s114, 8
      %s116 = scalar_lea.vmem %s1, %s115
      %s117 = scalar_lea.vmem %s111, 48
      %v118 = vld [vmem:[%s117 + $0x1] sm:$0xff]
      %v119 = vld [vmem:[%s117 + $0x9] sm:$0xff]
      %v120 = vld [vmem:[%s117 + $0x19] sm:$0xff]
      %v121 = vld [vmem:[%s117 + $0x21] sm:$0xff]
      %v122 = vld [vmem:[%s117 + $0x31] sm:$0xff]
      %v123 = vld [vmem:[%s117 + $0x39] sm:$0xff]
      %v124 = vld [vmem:[%s117 + $0x49] sm:$0xff]
      %v125 = vld [vmem:[%s117 + $0x51] sm:$0xff]
      %v126 = vld [vmem:[%s117 + $0x61] sm:$0xff]
      %v127 = vld [vmem:[%s117 + $0x69] sm:$0xff]
      %v128 = vld [vmem:[%s117 + $0x79] sm:$0xff]
      %v129 = vld [vmem:[%s117 + $0x81] sm:$0xff]
      %v130 = vld [vmem:[%s117 + $0x91] sm:$0xff]
      %v131 = vld [vmem:[%s117 + $0x99] sm:$0xff]
      %v132 = vld [vmem:[%s117 + $0xa9] sm:$0xff]
      %v133 = vld [vmem:[%s117 + $0xb1] sm:$0xff]
      %v134 = vld [vmem:[%s117 + $0xc1] sm:$0xff]
      %v135 = vld [vmem:[%s117 + $0xc9] sm:$0xff]
      %v136 = vld [vmem:[%s117 + $0xd9] sm:$0xff]
      %v137 = vld [vmem:[%s117 + $0xe1] sm:$0xff]
      %v138 = vld [vmem:[%s117 + $0xf1] sm:$0xff]
      %v139 = vld [vmem:[%s117 + $0xf9] sm:$0xff]
      %v140 = vld [vmem:[%s117 + $0x109] sm:$0xff]
      %v141 = vld [vmem:[%s117 + $0x111] sm:$0xff]
      %v142 = vld [vmem:[%s117 + $0x121] sm:$0xff]
      %v143 = vld [vmem:[%s117 + $0x129] sm:$0xff]
      %v144 = vld [vmem:[%s117 + $0x139] sm:$0xff]
      %v145 = vld [vmem:[%s117 + $0x141] sm:$0xff]
      %v146 = vld [vmem:[%s117 + $0x151] sm:$0xff]
      %v147 = vld [vmem:[%s117 + $0x159] sm:$0xff]
      %v148 = vld [vmem:[%s117 + $0x169] sm:$0xff]
      %v149 = vld [vmem:[%s117 + $0x171] sm:$0xff]
      %v150 = vld [vmem:[%s111 + $0x1] sm:$0xff]
      %v151 = vld [vmem:[%s111 + $0x9] sm:$0xff]
      %v152 = vld [vmem:[%s111 + $0x19] sm:$0xff]
      %v153 = vld [vmem:[%s111 + $0x21] sm:$0xff]
      %v154 = vld [vmem:[%s111 + $0x31] sm:$0xff]
      %v155 = vld [vmem:[%s111 + $0x39] sm:$0xff]
      %v156 = vld [vmem:[%s111 + $0x49] sm:$0xff]
      %v157 = vld [vmem:[%s111 + $0x51] sm:$0xff]
      %v158 = vld [vmem:[%s111 + $0x61] sm:$0xff]
      %v159 = vld [vmem:[%s111 + $0x69] sm:$0xff]
      %v160 = vld [vmem:[%s111 + $0x79] sm:$0xff]
      %v161 = vld [vmem:[%s111 + $0x81] sm:$0xff]
      %v162 = vld [vmem:[%s111 + $0x91] sm:$0xff]
      %v163 = vld [vmem:[%s111 + $0x99] sm:$0xff]
      %v164 = vld [vmem:[%s111 + $0xa9] sm:$0xff]
      %v165 = vld [vmem:[%s111 + $0xb1] sm:$0xff]
      %v166 = vld [vmem:[%s111 + $0xc1] sm:$0xff]
      %v167 = vld [vmem:[%s111 + $0xc9] sm:$0xff]
      %v168 = vld [vmem:[%s111 + $0xd9] sm:$0xff]
      %v169 = vld [vmem:[%s111 + $0xe1] sm:$0xff]
      %v170 = vld [vmem:[%s111 + $0xf1] sm:$0xff]
      %v171 = vld [vmem:[%s111 + $0xf9] sm:$0xff]
      %v172 = vld [vmem:[%s111 + $0x109] sm:$0xff]
      %v173 = vld [vmem:[%s111 + $0x111] sm:$0xff]
      %v174 = vld [vmem:[%s111 + $0x121] sm:$0xff]
      %v175 = vld [vmem:[%s111 + $0x129] sm:$0xff]
      %v176 = vld [vmem:[%s111 + $0x139] sm:$0xff]
      %v177 = vld [vmem:[%s111 + $0x141] sm:$0xff]
      %v178 = vld [vmem:[%s111 + $0x151] sm:$0xff]
      %v179 = vld [vmem:[%s111 + $0x159] sm:$0xff]
      %v180 = vld [vmem:[%s111 + $0x169] sm:$0xff]
      %v181 = vld [vmem:[%s111 + $0x171] sm:$0xff]
      %v182 = vsub.f32 %v118, %v150
      %v183 = vsub.f32 %v119, %v151
      %v184 = vsub.f32 %v120, %v152
      %v185 = vsub.f32 %v121, %v153
      %v186 = vsub.f32 %v122, %v154
      %v187 = vsub.f32 %v123, %v155
      %v188 = vsub.f32 %v124, %v156
      %v189 = vsub.f32 %v125, %v157
      %v190 = vsub.f32 %v126, %v158
      %v191 = vsub.f32 %v127, %v159
      %v192 = vsub.f32 %v128, %v160
      %v193 = vsub.f32 %v129, %v161
      %v194 = vsub.f32 %v130, %v162
      %v195 = vsub.f32 %v131, %v163
      %v196 = vsub.f32 %v132, %v164
      %v197 = vsub.f32 %v133, %v165
      %v198 = vsub.f32 %v134, %v166
      %v199 = vsub.f32 %v135, %v167
      %v200 = vsub.f32 %v136, %v168
      %v201 = vsub.f32 %v137, %v169
      %v202 = vsub.f32 %v138, %v170
      %v203 = vsub.f32 %v139, %v171
      %v204 = vsub.f32 %v140, %v172
      %v205 = vsub.f32 %v141, %v173
      %v206 = vsub.f32 %v142, %v174
      %v207 = vsub.f32 %v143, %v175
      %v208 = vsub.f32 %v144, %v176
      %v209 = vsub.f32 %v145, %v177
      %v210 = vsub.f32 %v146, %v178
      %v211 = vsub.f32 %v147, %v179
      %v212 = vsub.f32 %v148, %v180
      %v213 = vsub.f32 %v149, %v181
      %s214 = scalar_lea.vmem %s111, 24
      %v215 = vld [vmem:[%s214 + $0x2] sm:$0xff]
      %v216 = vld [vmem:[%s214 + $0xa] sm:$0xff]
      %v217 = vld [vmem:[%s214 + $0x1a] sm:$0xff]
      %v218 = vld [vmem:[%s214 + $0x22] sm:$0xff]
      %v219 = vld [vmem:[%s214 + $0x32] sm:$0xff]
      %v220 = vld [vmem:[%s214 + $0x3a] sm:$0xff]
      %v221 = vld [vmem:[%s214 + $0x4a] sm:$0xff]
      %v222 = vld [vmem:[%s214 + $0x52] sm:$0xff]
      %v223 = vld [vmem:[%s214 + $0x62] sm:$0xff]
      %v224 = vld [vmem:[%s214 + $0x6a] sm:$0xff]
      %v225 = vld [vmem:[%s214 + $0x7a] sm:$0xff]
      %v226 = vld [vmem:[%s214 + $0x82] sm:$0xff]
      %v227 = vld [vmem:[%s214 + $0x92] sm:$0xff]
      %v228 = vld [vmem:[%s214 + $0x9a] sm:$0xff]
      %v229 = vld [vmem:[%s214 + $0xaa] sm:$0xff]
      %v230 = vld [vmem:[%s214 + $0xb2] sm:$0xff]
      %v231 = vld [vmem:[%s214 + $0xc2] sm:$0xff]
      %v232 = vld [vmem:[%s214 + $0xca] sm:$0xff]
      %v233 = vld [vmem:[%s214 + $0xda] sm:$0xff]
      %v234 = vld [vmem:[%s214 + $0xe2] sm:$0xff]
      %v235 = vld [vmem:[%s214 + $0xf2] sm:$0xff]
      %v236 = vld [vmem:[%s214 + $0xfa] sm:$0xff]
      %v237 = vld [vmem:[%s214 + $0x10a] sm:$0xff]
      %v238 = vld [vmem:[%s214 + $0x112] sm:$0xff]
      %v239 = vld [vmem:[%s214 + $0x122] sm:$0xff]
      %v240 = vld [vmem:[%s214 + $0x12a] sm:$0xff]
      %v241 = vld [vmem:[%s214 + $0x13a] sm:$0xff]
      %v242 = vld [vmem:[%s214 + $0x142] sm:$0xff]
      %v243 = vld [vmem:[%s214 + $0x152] sm:$0xff]
      %v244 = vld [vmem:[%s214 + $0x15a] sm:$0xff]
      %v245 = vld [vmem:[%s214 + $0x16a] sm:$0xff]
      %v246 = vld [vmem:[%s214 + $0x172] sm:$0xff]
      %v247 = vld [vmem:[%s214] sm:$0xff]
      %v248 = vld [vmem:[%s214 + $0x8] sm:$0xff]
      %v249 = vld [vmem:[%s214 + $0x18] sm:$0xff]
      %v250 = vld [vmem:[%s214 + $0x20] sm:$0xff]
      %v251 = vld [vmem:[%s214 + $0x30] sm:$0xff]
      %v252 = vld [vmem:[%s214 + $0x38] sm:$0xff]
      %v253 = vld [vmem:[%s214 + $0x48] sm:$0xff]
      %v254 = vld [vmem:[%s214 + $0x50] sm:$0xff]
      %v255 = vld [vmem:[%s214 + $0x60] sm:$0xff]
      %v256 = vld [vmem:[%s214 + $0x68] sm:$0xff]
      %v257 = vld [vmem:[%s214 + $0x78] sm:$0xff]
      %v258 = vld [vmem:[%s214 + $0x80] sm:$0xff]
      %v259 = vld [vmem:[%s214 + $0x90] sm:$0xff]
      %v260 = vld [vmem:[%s214 + $0x98] sm:$0xff]
      %v261 = vld [vmem:[%s214 + $0xa8] sm:$0xff]
      %v262 = vld [vmem:[%s214 + $0xb0] sm:$0xff]
      %v263 = vld [vmem:[%s214 + $0xc0] sm:$0xff]
      %v264 = vld [vmem:[%s214 + $0xc8] sm:$0xff]
      %v265 = vld [vmem:[%s214 + $0xd8] sm:$0xff]
      %v266 = vld [vmem:[%s214 + $0xe0] sm:$0xff]
      %v267 = vld [vmem:[%s214 + $0xf0] sm:$0xff]
      %v268 = vld [vmem:[%s214 + $0xf8] sm:$0xff]
      %v269 = vld [vmem:[%s214 + $0x108] sm:$0xff]
      %v270 = vld [vmem:[%s214 + $0x110] sm:$0xff]
      %v271 = vld [vmem:[%s214 + $0x120] sm:$0xff]
      %v272 = vld [vmem:[%s214 + $0x128] sm:$0xff]
      %v273 = vld [vmem:[%s214 + $0x138] sm:$0xff]
      %v274 = vld [vmem:[%s214 + $0x140] sm:$0xff]
      %v275 = vld [vmem:[%s214 + $0x150] sm:$0xff]
      %v276 = vld [vmem:[%s214 + $0x158] sm:$0xff]
      %v277 = vld [vmem:[%s214 + $0x168] sm:$0xff]
      %v278 = vld [vmem:[%s214 + $0x170] sm:$0xff]
      %v279 = vsub.f32 %v215, %v247
      %v280 = vsub.f32 %v216, %v248
      %v281 = vsub.f32 %v217, %v249
      %v282 = vsub.f32 %v218, %v250
      %v283 = vsub.f32 %v219, %v251
      %v284 = vsub.f32 %v220, %v252
      %v285 = vsub.f32 %v221, %v253
      %v286 = vsub.f32 %v222, %v254
      %v287 = vsub.f32 %v223, %v255
      %v288 = vsub.f32 %v224, %v256
      %v289 = vsub.f32 %v225, %v257
      %v290 = vsub.f32 %v226, %v258
      %v291 = vsub.f32 %v227, %v259
      %v292 = vsub.f32 %v228, %v260
      %v293 = vsub.f32 %v229, %v261
      %v294 = vsub.f32 %v230, %v262
      %v295 = vsub.f32 %v231, %v263
      %v296 = vsub.f32 %v232, %v264
      %v297 = vsub.f32 %v233, %v265
      %v298 = vsub.f32 %v234, %v266
      %v299 = vsub.f32 %v235, %v267
      %v300 = vsub.f32 %v236, %v268
      %v301 = vsub.f32 %v237, %v269
      %v302 = vsub.f32 %v238, %v270
      %v303 = vsub.f32 %v239, %v271
      %v304 = vsub.f32 %v240, %v272
      %v305 = vsub.f32 %v241, %v273
      %v306 = vsub.f32 %v242, %v274
      %v307 = vsub.f32 %v243, %v275
      %v308 = vsub.f32 %v244, %v276
      %v309 = vsub.f32 %v245, %v277
      %v310 = vsub.f32 %v246, %v278
      %v311 = vmul.f32 %v182, %v182
      %v312 = vmul.f32 %v183, %v183
      %v313 = vmul.f32 %v184, %v184
      %v314 = vmul.f32 %v185, %v185
      %v315 = vmul.f32 %v186, %v186
      %v316 = vmul.f32 %v187, %v187
      %v317 = vmul.f32 %v188, %v188
      %v318 = vmul.f32 %v189, %v189
      %v319 = vmul.f32 %v190, %v190
      %v320 = vmul.f32 %v191, %v191
      %v321 = vmul.f32 %v192, %v192
      %v322 = vmul.f32 %v193, %v193
      %v323 = vmul.f32 %v194, %v194
      %v324 = vmul.f32 %v195, %v195
      %v325 = vmul.f32 %v196, %v196
      %v326 = vmul.f32 %v197, %v197
      %v327 = vmul.f32 %v198, %v198
      %v328 = vmul.f32 %v199, %v199
      %v329 = vmul.f32 %v200, %v200
      %v330 = vmul.f32 %v201, %v201
      %v331 = vmul.f32 %v202, %v202
      %v332 = vmul.f32 %v203, %v203
      %v333 = vmul.f32 %v204, %v204
      %v334 = vmul.f32 %v205, %v205
      %v335 = vmul.f32 %v206, %v206
      %v336 = vmul.f32 %v207, %v207
      %v337 = vmul.f32 %v208, %v208
      %v338 = vmul.f32 %v209, %v209
      %v339 = vmul.f32 %v210, %v210
      %v340 = vmul.f32 %v211, %v211
      %v341 = vmul.f32 %v212, %v212
      %v342 = vmul.f32 %v213, %v213
      %v343 = vmul.f32 %v279, %v279
      %v344 = vmul.f32 %v280, %v280
      %v345 = vmul.f32 %v281, %v281
      %v346 = vmul.f32 %v282, %v282
      %v347 = vmul.f32 %v283, %v283
      %v348 = vmul.f32 %v284, %v284
      %v349 = vmul.f32 %v285, %v285
      %v350 = vmul.f32 %v286, %v286
      %v351 = vmul.f32 %v287, %v287
      %v352 = vmul.f32 %v288, %v288
      %v353 = vmul.f32 %v289, %v289
      %v354 = vmul.f32 %v290, %v290
      %v355 = vmul.f32 %v291, %v291
      %v356 = vmul.f32 %v292, %v292
      %v357 = vmul.f32 %v293, %v293
      %v358 = vmul.f32 %v294, %v294
      %v359 = vmul.f32 %v295, %v295
      %v360 = vmul.f32 %v296, %v296
      %v361 = vmul.f32 %v297, %v297
      %v362 = vmul.f32 %v298, %v298
      %v363 = vmul.f32 %v299, %v299
      %v364 = vmul.f32 %v300, %v300
      %v365 = vmul.f32 %v301, %v301
      %v366 = vmul.f32 %v302, %v302
      %v367 = vmul.f32 %v303, %v303
      %v368 = vmul.f32 %v304, %v304
      %v369 = vmul.f32 %v305, %v305
      %v370 = vmul.f32 %v306, %v306
      %v371 = vmul.f32 %v307, %v307
      %v372 = vmul.f32 %v308, %v308
      %v373 = vmul.f32 %v309, %v309
      %v374 = vmul.f32 %v310, %v310
      %v375 = vadd.f32 %v311, %v343
      %v376 = vadd.f32 %v312, %v344
      %v377 = vadd.f32 %v313, %v345
      %v378 = vadd.f32 %v314, %v346
      %v379 = vadd.f32 %v315, %v347
      %v380 = vadd.f32 %v316, %v348
      %v381 = vadd.f32 %v317, %v349
      %v382 = vadd.f32 %v318, %v350
      %v383 = vadd.f32 %v319, %v351
      %v384 = vadd.f32 %v320, %v352
      %v385 = vadd.f32 %v321, %v353
      %v386 = vadd.f32 %v322, %v354
      %v387 = vadd.f32 %v323, %v355
      %v388 = vadd.f32 %v324, %v356
      %v389 = vadd.f32 %v325, %v357
      %v390 = vadd.f32 %v326, %v358
      %v391 = vadd.f32 %v327, %v359
      %v392 = vadd.f32 %v328, %v360
      %v393 = vadd.f32 %v329, %v361
      %v394 = vadd.f32 %v330, %v362
      %v395 = vadd.f32 %v331, %v363
      %v396 = vadd.f32 %v332, %v364
      %v397 = vadd.f32 %v333, %v365
      %v398 = vadd.f32 %v334, %v366
      %v399 = vadd.f32 %v335, %v367
      %v400 = vadd.f32 %v336, %v368
      %v401 = vadd.f32 %v337, %v369
      %v402 = vadd.f32 %v338, %v370
      %v403 = vadd.f32 %v339, %v371
      %v404 = vadd.f32 %v340, %v372
      %v405 = vadd.f32 %v341, %v373
      %v406 = vadd.f32 %v342, %v374
      %v407 = vadd.f32 %v375, 1e-06
      %v408 = vadd.f32 %v376, 1e-06
      %v409 = vadd.f32 %v377, 1e-06
      %v410 = vadd.f32 %v378, 1e-06
      %v411 = vadd.f32 %v379, 1e-06
      %v412 = vadd.f32 %v380, 1e-06
      %v413 = vadd.f32 %v381, 1e-06
      %v414 = vadd.f32 %v382, 1e-06
      %v415 = vadd.f32 %v383, 1e-06
      %v416 = vadd.f32 %v384, 1e-06
      %v417 = vadd.f32 %v385, 1e-06
      %v418 = vadd.f32 %v386, 1e-06
      %v419 = vadd.f32 %v387, 1e-06
      %v420 = vadd.f32 %v388, 1e-06
      %v421 = vadd.f32 %v389, 1e-06
      %v422 = vadd.f32 %v390, 1e-06
      %v423 = vadd.f32 %v391, 1e-06
      %v424 = vadd.f32 %v392, 1e-06
      %v425 = vadd.f32 %v393, 1e-06
      %v426 = vadd.f32 %v394, 1e-06
      %v427 = vadd.f32 %v395, 1e-06
      %v428 = vadd.f32 %v396, 1e-06
      %v429 = vadd.f32 %v397, 1e-06
      %v430 = vadd.f32 %v398, 1e-06
      %v431 = vadd.f32 %v399, 1e-06
      %v432 = vadd.f32 %v400, 1e-06
      %v433 = vadd.f32 %v401, 1e-06
      %v434 = vadd.f32 %v402, 1e-06
      %v435 = vadd.f32 %v403, 1e-06
      %v436 = vadd.f32 %v404, 1e-06
      %v437 = vadd.f32 %v405, 1e-06
      %v438 = vadd.f32 %v406, 1e-06
      %v439 = vrsqrt.pop %v407
      %v440 = vmul.f32 %v407, %v439
      %vm441 = vcmp.eq.f32.partialorder %v407, inf
      %v442 = vsel %vm441, %v407, %v440
      %vm443 = vcmp.eq.f32.partialorder %v407, 0.0
      %v444 = vand.u32 %v407, 2147483648
      %v445 = vsel %vm443, %v444, %v442
      %v446 = vrsqrt.pop %v408
      %v447 = vmul.f32 %v408, %v446
      %vm448 = vcmp.eq.f32.partialorder %v408, inf
      %v449 = vsel %vm448, %v408, %v447
      %vm450 = vcmp.eq.f32.partialorder %v408, 0.0
      %v451 = vand.u32 %v408, 2147483648
      %v452 = vsel %vm450, %v451, %v449
      %v453 = vrsqrt.pop %v409
      %v454 = vmul.f32 %v409, %v453
      %vm455 = vcmp.eq.f32.partialorder %v409, inf
      %v456 = vsel %vm455, %v409, %v454
      %vm457 = vcmp.eq.f32.partialorder %v409, 0.0
      %v458 = vand.u32 %v409, 2147483648
      %v459 = vsel %vm457, %v458, %v456
      %v460 = vrsqrt.pop %v410
      %v461 = vmul.f32 %v410, %v460
      %vm462 = vcmp.eq.f32.partialorder %v410, inf
      %v463 = vsel %vm462, %v410, %v461
      %vm464 = vcmp.eq.f32.partialorder %v410, 0.0
      %v465 = vand.u32 %v410, 2147483648
      %v466 = vsel %vm464, %v465, %v463
      %v467 = vrsqrt.pop %v411
      %v468 = vmul.f32 %v411, %v467
      %vm469 = vcmp.eq.f32.partialorder %v411, inf
      %v470 = vsel %vm469, %v411, %v468
      %vm471 = vcmp.eq.f32.partialorder %v411, 0.0
      %v472 = vand.u32 %v411, 2147483648
      %v473 = vsel %vm471, %v472, %v470
      %v474 = vrsqrt.pop %v412
      %v475 = vmul.f32 %v412, %v474
      %vm476 = vcmp.eq.f32.partialorder %v412, inf
      %v477 = vsel %vm476, %v412, %v475
      %vm478 = vcmp.eq.f32.partialorder %v412, 0.0
      %v479 = vand.u32 %v412, 2147483648
      %v480 = vsel %vm478, %v479, %v477
      %v481 = vrsqrt.pop %v413
      %v482 = vmul.f32 %v413, %v481
      %vm483 = vcmp.eq.f32.partialorder %v413, inf
      %v484 = vsel %vm483, %v413, %v482
      %vm485 = vcmp.eq.f32.partialorder %v413, 0.0
      %v486 = vand.u32 %v413, 2147483648
      %v487 = vsel %vm485, %v486, %v484
      %v488 = vrsqrt.pop %v414
      %v489 = vmul.f32 %v414, %v488
      %vm490 = vcmp.eq.f32.partialorder %v414, inf
      %v491 = vsel %vm490, %v414, %v489
      %vm492 = vcmp.eq.f32.partialorder %v414, 0.0
      %v493 = vand.u32 %v414, 2147483648
      %v494 = vsel %vm492, %v493, %v491
      %v495 = vrsqrt.pop %v415
      %v496 = vmul.f32 %v415, %v495
      %vm497 = vcmp.eq.f32.partialorder %v415, inf
      %v498 = vsel %vm497, %v415, %v496
      %vm499 = vcmp.eq.f32.partialorder %v415, 0.0
      %v500 = vand.u32 %v415, 2147483648
      %v501 = vsel %vm499, %v500, %v498
      %v502 = vrsqrt.pop %v416
      %v503 = vmul.f32 %v416, %v502
      %vm504 = vcmp.eq.f32.partialorder %v416, inf
      %v505 = vsel %vm504, %v416, %v503
      %vm506 = vcmp.eq.f32.partialorder %v416, 0.0
      %v507 = vand.u32 %v416, 2147483648
      %v508 = vsel %vm506, %v507, %v505
      %v509 = vrsqrt.pop %v417
      %v510 = vmul.f32 %v417, %v509
      %vm511 = vcmp.eq.f32.partialorder %v417, inf
      %v512 = vsel %vm511, %v417, %v510
      %vm513 = vcmp.eq.f32.partialorder %v417, 0.0
      %v514 = vand.u32 %v417, 2147483648
      %v515 = vsel %vm513, %v514, %v512
      %v516 = vrsqrt.pop %v418
      %v517 = vmul.f32 %v418, %v516
      %vm518 = vcmp.eq.f32.partialorder %v418, inf
      %v519 = vsel %vm518, %v418, %v517
      %vm520 = vcmp.eq.f32.partialorder %v418, 0.0
      %v521 = vand.u32 %v418, 2147483648
      %v522 = vsel %vm520, %v521, %v519
      %v523 = vrsqrt.pop %v419
      %v524 = vmul.f32 %v419, %v523
      %vm525 = vcmp.eq.f32.partialorder %v419, inf
      %v526 = vsel %vm525, %v419, %v524
      %vm527 = vcmp.eq.f32.partialorder %v419, 0.0
      %v528 = vand.u32 %v419, 2147483648
      %v529 = vsel %vm527, %v528, %v526
      %v530 = vrsqrt.pop %v420
      %v531 = vmul.f32 %v420, %v530
      %vm532 = vcmp.eq.f32.partialorder %v420, inf
      %v533 = vsel %vm532, %v420, %v531
      %vm534 = vcmp.eq.f32.partialorder %v420, 0.0
      %v535 = vand.u32 %v420, 2147483648
      %v536 = vsel %vm534, %v535, %v533
      %v537 = vrsqrt.pop %v421
      %v538 = vmul.f32 %v421, %v537
      %vm539 = vcmp.eq.f32.partialorder %v421, inf
      %v540 = vsel %vm539, %v421, %v538
      %vm541 = vcmp.eq.f32.partialorder %v421, 0.0
      %v542 = vand.u32 %v421, 2147483648
      %v543 = vsel %vm541, %v542, %v540
      %v544 = vrsqrt.pop %v422
      %v545 = vmul.f32 %v422, %v544
      %vm546 = vcmp.eq.f32.partialorder %v422, inf
      %v547 = vsel %vm546, %v422, %v545
      %vm548 = vcmp.eq.f32.partialorder %v422, 0.0
      %v549 = vand.u32 %v422, 2147483648
      %v550 = vsel %vm548, %v549, %v547
      %v551 = vrsqrt.pop %v423
      %v552 = vmul.f32 %v423, %v551
      %vm553 = vcmp.eq.f32.partialorder %v423, inf
      %v554 = vsel %vm553, %v423, %v552
      %vm555 = vcmp.eq.f32.partialorder %v423, 0.0
      %v556 = vand.u32 %v423, 2147483648
      %v557 = vsel %vm555, %v556, %v554
      %v558 = vrsqrt.pop %v424
      %v559 = vmul.f32 %v424, %v558
      %vm560 = vcmp.eq.f32.partialorder %v424, inf
      %v561 = vsel %vm560, %v424, %v559
      %vm562 = vcmp.eq.f32.partialorder %v424, 0.0
      %v563 = vand.u32 %v424, 2147483648
      %v564 = vsel %vm562, %v563, %v561
      %v565 = vrsqrt.pop %v425
      %v566 = vmul.f32 %v425, %v565
      %vm567 = vcmp.eq.f32.partialorder %v425, inf
      %v568 = vsel %vm567, %v425, %v566
      %vm569 = vcmp.eq.f32.partialorder %v425, 0.0
      %v570 = vand.u32 %v425, 2147483648
      %v571 = vsel %vm569, %v570, %v568
      %v572 = vrsqrt.pop %v426
      %v573 = vmul.f32 %v426, %v572
      %vm574 = vcmp.eq.f32.partialorder %v426, inf
      %v575 = vsel %vm574, %v426, %v573
      %vm576 = vcmp.eq.f32.partialorder %v426, 0.0
      %v577 = vand.u32 %v426, 2147483648
      %v578 = vsel %vm576, %v577, %v575
      %v579 = vrsqrt.pop %v427
      %v580 = vmul.f32 %v427, %v579
      %vm581 = vcmp.eq.f32.partialorder %v427, inf
      %v582 = vsel %vm581, %v427, %v580
      %vm583 = vcmp.eq.f32.partialorder %v427, 0.0
      %v584 = vand.u32 %v427, 2147483648
      %v585 = vsel %vm583, %v584, %v582
      %v586 = vrsqrt.pop %v428
      %v587 = vmul.f32 %v428, %v586
      %vm588 = vcmp.eq.f32.partialorder %v428, inf
      %v589 = vsel %vm588, %v428, %v587
      %vm590 = vcmp.eq.f32.partialorder %v428, 0.0
      %v591 = vand.u32 %v428, 2147483648
      %v592 = vsel %vm590, %v591, %v589
      %v593 = vrsqrt.pop %v429
      %v594 = vmul.f32 %v429, %v593
      %vm595 = vcmp.eq.f32.partialorder %v429, inf
      %v596 = vsel %vm595, %v429, %v594
      %vm597 = vcmp.eq.f32.partialorder %v429, 0.0
      %v598 = vand.u32 %v429, 2147483648
      %v599 = vsel %vm597, %v598, %v596
      %v600 = vrsqrt.pop %v430
      %v601 = vmul.f32 %v430, %v600
      %vm602 = vcmp.eq.f32.partialorder %v430, inf
      %v603 = vsel %vm602, %v430, %v601
      %vm604 = vcmp.eq.f32.partialorder %v430, 0.0
      %v605 = vand.u32 %v430, 2147483648
      %v606 = vsel %vm604, %v605, %v603
      %v607 = vrsqrt.pop %v431
      %v608 = vmul.f32 %v431, %v607
      %vm609 = vcmp.eq.f32.partialorder %v431, inf
      %v610 = vsel %vm609, %v431, %v608
      %vm611 = vcmp.eq.f32.partialorder %v431, 0.0
      %v612 = vand.u32 %v431, 2147483648
      %v613 = vsel %vm611, %v612, %v610
      %v614 = vrsqrt.pop %v432
      %v615 = vmul.f32 %v432, %v614
      %vm616 = vcmp.eq.f32.partialorder %v432, inf
      %v617 = vsel %vm616, %v432, %v615
      %vm618 = vcmp.eq.f32.partialorder %v432, 0.0
      %v619 = vand.u32 %v432, 2147483648
      %v620 = vsel %vm618, %v619, %v617
      %v621 = vrsqrt.pop %v433
      %v622 = vmul.f32 %v433, %v621
      %vm623 = vcmp.eq.f32.partialorder %v433, inf
      %v624 = vsel %vm623, %v433, %v622
      %vm625 = vcmp.eq.f32.partialorder %v433, 0.0
      %v626 = vand.u32 %v433, 2147483648
      %v627 = vsel %vm625, %v626, %v624
      %v628 = vrsqrt.pop %v434
      %v629 = vmul.f32 %v434, %v628
      %vm630 = vcmp.eq.f32.partialorder %v434, inf
      %v631 = vsel %vm630, %v434, %v629
      %vm632 = vcmp.eq.f32.partialorder %v434, 0.0
      %v633 = vand.u32 %v434, 2147483648
      %v634 = vsel %vm632, %v633, %v631
      %v635 = vrsqrt.pop %v435
      %v636 = vmul.f32 %v435, %v635
      %vm637 = vcmp.eq.f32.partialorder %v435, inf
      %v638 = vsel %vm637, %v435, %v636
      %vm639 = vcmp.eq.f32.partialorder %v435, 0.0
      %v640 = vand.u32 %v435, 2147483648
      %v641 = vsel %vm639, %v640, %v638
      %v642 = vrsqrt.pop %v436
      %v643 = vmul.f32 %v436, %v642
      %vm644 = vcmp.eq.f32.partialorder %v436, inf
      %v645 = vsel %vm644, %v436, %v643
      %vm646 = vcmp.eq.f32.partialorder %v436, 0.0
      %v647 = vand.u32 %v436, 2147483648
      %v648 = vsel %vm646, %v647, %v645
      %v649 = vrsqrt.pop %v437
      %v650 = vmul.f32 %v437, %v649
      %vm651 = vcmp.eq.f32.partialorder %v437, inf
      %v652 = vsel %vm651, %v437, %v650
      %vm653 = vcmp.eq.f32.partialorder %v437, 0.0
      %v654 = vand.u32 %v437, 2147483648
      %v655 = vsel %vm653, %v654, %v652
      %v656 = vrsqrt.pop %v438
      %v657 = vmul.f32 %v438, %v656
      %vm658 = vcmp.eq.f32.partialorder %v438, inf
      %v659 = vsel %vm658, %v438, %v657
      %vm660 = vcmp.eq.f32.partialorder %v438, 0.0
      %v661 = vand.u32 %v438, 2147483648
      %v662 = vsel %vm660, %v661, %v659
      %vm663 = vcmask 23552
      %664 = vst.msk [vmem:[%s116] sm:$0xff] %vm663, %v445
      %665 = vst.msk [vmem:[%s116 + $0x8] sm:$0xff] %vm663, %v452
      %666 = vst.msk [vmem:[%s116 + $0x10] sm:$0xff] %vm663, %v459
      %667 = vst.msk [vmem:[%s116 + $0x18] sm:$0xff] %vm663, %v466
      %668 = vst.msk [vmem:[%s116 + $0x20] sm:$0xff] %vm663, %v473
      %669 = vst.msk [vmem:[%s116 + $0x28] sm:$0xff] %vm663, %v480
      %670 = vst.msk [vmem:[%s116 + $0x30] sm:$0xff] %vm663, %v487
      %671 = vst.msk [vmem:[%s116 + $0x38] sm:$0xff] %vm663, %v494
      %672 = vst.msk [vmem:[%s116 + $0x40] sm:$0xff] %vm663, %v501
      %673 = vst.msk [vmem:[%s116 + $0x48] sm:$0xff] %vm663, %v508
      %674 = vst.msk [vmem:[%s116 + $0x50] sm:$0xff] %vm663, %v515
      %675 = vst.msk [vmem:[%s116 + $0x58] sm:$0xff] %vm663, %v522
      %676 = vst.msk [vmem:[%s116 + $0x60] sm:$0xff] %vm663, %v529
      %677 = vst.msk [vmem:[%s116 + $0x68] sm:$0xff] %vm663, %v536
      %678 = vst.msk [vmem:[%s116 + $0x70] sm:$0xff] %vm663, %v543
      %679 = vst.msk [vmem:[%s116 + $0x78] sm:$0xff] %vm663, %v550
      %680 = vst.msk [vmem:[%s116 + $0x80] sm:$0xff] %vm663, %v557
      %681 = vst.msk [vmem:[%s116 + $0x88] sm:$0xff] %vm663, %v564
      %682 = vst.msk [vmem:[%s116 + $0x90] sm:$0xff] %vm663, %v571
      %683 = vst.msk [vmem:[%s116 + $0x98] sm:$0xff] %vm663, %v578
      %684 = vst.msk [vmem:[%s116 + $0xa0] sm:$0xff] %vm663, %v585
      %685 = vst.msk [vmem:[%s116 + $0xa8] sm:$0xff] %vm663, %v592
      %686 = vst.msk [vmem:[%s116 + $0xb0] sm:$0xff] %vm663, %v599
      %687 = vst.msk [vmem:[%s116 + $0xb8] sm:$0xff] %vm663, %v606
      %688 = vst.msk [vmem:[%s116 + $0xc0] sm:$0xff] %vm663, %v613
      %689 = vst.msk [vmem:[%s116 + $0xc8] sm:$0xff] %vm663, %v620
      %690 = vst.msk [vmem:[%s116 + $0xd0] sm:$0xff] %vm663, %v627
      %691 = vst.msk [vmem:[%s116 + $0xd8] sm:$0xff] %vm663, %v634
      %692 = vst.msk [vmem:[%s116 + $0xe0] sm:$0xff] %vm663, %v641
      %693 = vst.msk [vmem:[%s116 + $0xe8] sm:$0xff] %vm663, %v648
      %694 = vst.msk [vmem:[%s116 + $0xf0] sm:$0xff] %vm663, %v655
      %695 = vst.msk [vmem:[%s116 + $0xf8] sm:$0xff] %vm663, %v662
      %p696 = scmp.lt.s32.totalorder %s12, 1
      %s697 = scalar_select %p696, %s12, 1
      %s698 = smul.addr %s697, 32
      %s699 = smul.addr %s698, 8
      %s700 = scalar_lea.vmem %s1, %s699
      // Predicated region
      $region25: #{get_gradient.1} parent=23 // pred_check
        %p701 = pneg %p56
      $region26: #{get_gradient.1} parent=23 // pred_check_branch
        %703 = sbr.rel (%p701) target = $region28
      $region27: #{get_gradient.1} parent=23 // pred_region
        _
      $region28: #{get_gradient.1} parent=23 // pred_fallthru
        _
    $region24: #{get_gradient.1} parent=5 // pred_fallthru
      _
    %p704 = scmp.le.s32.totalorder 2, %s7
    // Predicated region
    $region29: #{get_gradient.1} parent=5 // pred_check
      %p705 = pneg %p704
    $region30: #{get_gradient.1} parent=5 // pred_check_branch
      %707 = sbr.rel (%p705) target = $region32
    $region31: #{get_gradient.1} parent=5 // pred_region
      %s708 = ssub.s32 %s7, 2
      // Predicated region
      $region33: #{get_gradient.1} parent=31 // pred_check
        %p709 = pneg %p62
      $region34: #{get_gradient.1} parent=31 // pred_check_branch
        %711 = sbr.rel (%p709) target = $region36
      $region35: #{get_gradient.1} parent=31 // pred_region
        %p712 = scmp.lt.s32.totalorder %s13, 1
        %s713 = scalar_select %p712, %s13, 1
        %s714 = smul.addr %s713, 32
        %s715 = smul.addr %s714, 8
        %s716 = scalar_lea.vmem %s1, %s715
      $region36: #{get_gradient.1} parent=31 // pred_fallthru
        _
    $region32: #{get_gradient.1} parent=5 // pred_fallthru
      _
  $region6: #{get_gradient.1} parent=0 // loop_footer
    %s11 = sadd.s32 1, %s7
  $region7: #{get_gradient.1} parent=0 // loop_footer_branch
    %6 = sbr.rel target = $region3
  $region8: #{get_gradient.1} parent=0 // loop_exit
    _

</llo_original>
